<compile_context>
chip_gen: v7x
topology: tpu7x:2x2x1
jax: 0.10.0
libtpu: 0.0.40
codegen_flags: <defaults>
</compile_context>

<pallas_src>
import math

import jax
import jax.numpy as jnp
from jax.experimental import pallas as pl
from jax.experimental.pallas import tpu as pltpu


def _fixed_mask_kernel(mask_ref, o_ref):
    # mask_ref: (1, W) logits (lane-dense, possibly tiled copies of the (1,1,L)
    #           parameter) — same resident block for every grid step.
    # o_ref:    (TR, W) output block for the current grid step.
    m = jax.nn.sigmoid(mask_ref[...].astype(jnp.float32))          # EUP, tiny
    o_ref[...] = jnp.broadcast_to(m, o_ref.shape).astype(o_ref.dtype)


def _divisors(n):
    ds = set()
    i = 1
    while i * i <= n:
        if n % i == 0:
            ds.add(i)
            ds.add(n // i)
        i += 1
    return sorted(ds)


def _pick_row_tile(rows, width, itemsize, target_bytes=8 << 20):
    """Rows per output block.

    Must divide `rows` evenly and be a multiple of 8 (or equal `rows`, i.e.
    full extent) to satisfy the (8, 128) block constraint.  Prefers the largest
    block <= target_bytes that still leaves grid length >= 2 (so v7x can shard
    the store work across its two TensorCores).
    """
    cap_rows = max(1, target_bytes // (width * itemsize))
    cands = [d for d in _divisors(rows) if d % 8 == 0 or d == rows]
    pref = [d for d in cands if d <= cap_rows and rows // d >= 2]
    if pref:
        return max(pref)
    fit = [d for d in cands if d <= cap_rows]
    if fit:
        return max(fit)
    return min(cands)


def fixed_mask_forward(mask_param, x):
    """Pallas equivalent of FixedMask.forward(x) in eval mode.

    mask_param: (1, 1, L) float32 parameter (initialized to -10 like the module)
    x:          (B, C, L) — only its shape is used (broadcast target)
    returns:    (B, C, L) float32 mask = sigmoid(mask_param broadcast to x.shape)
    """
    B, C, L = x.shape
    assert mask_param.shape == (1, 1, L)

    out_dtype = jnp.float32                      # matches torch module output
    itemsize = jnp.dtype(out_dtype).itemsize
    rows_bc = B * C
    total = rows_bc * L

    # Choose a lane-dense flat view of the output.
    lcm = L * 128 // math.gcd(L, 128)
    if L % 128 == 0:
        width, reps, rows = L, 1, rows_bc
    elif total % lcm == 0:
        width, reps, rows = lcm, lcm // L, total // lcm
    else:
        # Fallback: full-extent last dim (legal, but masked vst.msk stores).
        width, reps, rows = L, 1, rows_bc

    tr = _pick_row_tile(rows, width, itemsize)
    grid = rows // tr

    # Lane-dense logit row: pure layout prep on <= a few hundred elements.
    # (The sigmoid itself is computed inside the kernel.)
    mask_row = mask_param.reshape(1, L)
    if reps > 1:
        mask_row = jnp.tile(mask_row, (1, reps))                  # (1, width)

    cost = pl.CostEstimate(
        flops=0,
        transcendentals=width * grid,
        bytes_accessed=total * itemsize + width * itemsize,
    )

    out_flat = pl.pallas_call(
        _fixed_mask_kernel,
        out_shape=jax.ShapeDtypeStruct((rows, width), out_dtype),
        grid_spec=pltpu.PrefetchScalarGridSpec(
            num_scalar_prefetch=0,
            grid=(grid,),
            in_specs=[
                # Same tiny (1, width) logit block every step — stays resident.
                pl.BlockSpec((1, width), lambda r: (0, 0)),
            ],
            out_specs=pl.BlockSpec((tr, width), lambda r: (r, 0)),
        ),
        compiler_params=pltpu.CompilerParams(
            dimension_semantics=("parallel",),
            # ~16 MiB double-buffered output blocks; explicit limit with ample
            # headroom on v7x (64 MiB physical) and v5e/v6e (128 MiB physical).
            vmem_limit_bytes=48 * 1024 * 1024,
        ),
        cost_estimate=cost,
    )(mask_row)

    return out_flat.reshape(B, C, L)


if __name__ == "__main__":
    # Small shapes consistent with the module: x is (B, C, L), mask is (1, 1, L).
    B, C, L = 2, 4, 16
    key = jax.random.PRNGKey(0)

    # Deterministic parameter init, exactly like the module:
    # nn.Parameter(torch.zeros(*input_shape) - 10)
    mask_param = jnp.zeros((1, 1, L), dtype=jnp.float32) - 10.0

    # Example input (only its shape matters for this forward).
    x = jax.random.normal(key, (B, C, L), dtype=jnp.float32)

    out = fixed_mask_forward(mask_param, x)
    out = jax.block_until_ready(out)

    # Sanity check against the plain-JAX reference of the PyTorch semantics.
    ref = jax.nn.sigmoid(jnp.broadcast_to(mask_param, x.shape))
    assert out.shape == x.shape
    assert out.dtype == jnp.float32
    assert jnp.allclose(out, ref, atol=1e-6), "mismatch vs reference"

    print("KERNEL_OK")
</pallas_src>

<mosaic_0001>
module attributes {stable_mosaic.version = 11 : i64} {
  func.func @_fixed_mask_kernel(%arg0: i32, %arg1: memref<1x128xf32, #tpu.memory_space<vmem>>, %arg2: memref<1x128xf32, #tpu.memory_space<vmem>>) attributes {dimension_semantics = [#tpu.dimension_semantics<parallel>], iteration_bounds = array<i64: 1>, scalar_prefetch = 0 : i64, scratch_operands = 0 : i64, tpu.core_type = #tpu.core_type<tc>, window_params = [{pipeline_mode = #tpu.pipeline_mode<synchronous>, transform_indices = @transform_0, window_bounds = array<i64: 1, 128>}, {transform_indices = @transform_1, window_bounds = array<i64: 1, 128>}]} {
    %c0 = arith.constant 0 : index
    %c0_0 = arith.constant 0 : index
    %0 = vector.load %arg1[%c0, %c0_0] : memref<1x128xf32, #tpu.memory_space<vmem>>, vector<1x128xf32>
    %1 = arith.negf %0 : vector<1x128xf32>
    %2 = math.exp %1 : vector<1x128xf32>
    %cst = arith.constant 1.000000e+00 : f32
    %3 = vector.broadcast %cst : f32 to vector<1x128xf32>
    %4 = arith.addf %3, %2 : vector<1x128xf32>
    %5 = arith.divf %3, %4 : vector<1x128xf32>
    %c0_1 = arith.constant 0 : index
    %c0_2 = arith.constant 0 : index
    %6 = vector.load %arg2[%c0_1, %c0_2] : memref<1x128xf32, #tpu.memory_space<vmem>>, vector<1x128xf32>
    tpu.vector_store %arg2[%c0_1, %c0_2], %5 {strides = array<i32>} : memref<1x128xf32, #tpu.memory_space<vmem>>, vector<1x128xf32>,
    return
  }
  func.func @transform_0(%arg0: i32) -> (i32, i32) {
    %c0_i32 = arith.constant 0 : i32
    %c0_i32_0 = arith.constant 0 : i32
    %c0_i32_1 = arith.constant 0 : i32
    return %c0_i32, %c0_i32_0 : i32, i32
  }
  func.func @transform_1(%arg0: i32) -> (i32, i32) {
    %c0_i32 = arith.constant 0 : i32
    %c0_i32_0 = arith.constant 0 : i32
    return %arg0, %c0_i32 : i32, i32
  }
}

</mosaic_0001>

<llo_original>
// kernel: tpu_custom_call.1
$region0: #{tpu_custom_call.1}
  #allocation0 [shape = 'u32[]', space=smem, size = 0x4, offset = 0x4, fixed_abs, tag = 'smem constant byte address 0x4 - core index']
  #allocation1 [shape = 'u32[144,128]{1,0:T(1,128)}', space=vmem, size = 0x12000, scoped, tag = 'internal scratch']
  %s0 = inlined_call_operand.hbm [shape: f32[1,128], index: 0, kind: input, shape index: {}]
  %s1 = inlined_call_operand.hbm [shape: f32[1,128], index: 1, kind: output, shape index: {}]
  %s2 = sld [smem:[#allocation0]]
  $region18: #{tpu_custom_call.1} parent=0
    _
  %s4 = ssub.s32 1, %s2
  %s5 = scalar_select 0, %s4, %s2
  $region1: #{tpu_custom_call.1} parent=0
    #allocation2 [shape = 'u8[512]{0}', space=vmem, size = 0x400, scoped, tag = 'input window, operand 0, single buffered']
    #allocation3 [shape = 's32[1]{0}', space=sflag, size = 0x4, scoped, tag = 'scoped memory for tpu_custom_call.1']
    #allocation4 [shape = 's32[1]{0}', space=sflag, size = 0x4, scoped, tag = 'scoped memory for tpu_custom_call.1']
    #allocation5 [shape = 'u8[512]{0}', space=vmem, size = 0x400, scoped, tag = 'output window, operand 0, single buffered']
    %6 = vsyncpa [#allocation3], 0
    %7 = vsyncpa [#allocation4], 0
    // Predicated region
    $region2: #{tpu_custom_call.1} parent=1 // pred_check
      _
    $region3: #{tpu_custom_call.1} parent=1 // pred_check_branch
      %9 = sbr.rel (0) target = $region5
    $region4: #{tpu_custom_call.1} parent=1 // pred_region
      %s11 = ssub.s32 16, 16
      %12 = vsyncadd [#allocation3], %s11
      %s14 = sshll.u32 [#allocation2], 4
      %s15 = int_to_ptr.vmem [resolvable:$true] %s14
      %17 = dma.hbm_to_vmem [thread:$0]  %s0, 16, %s15, [#allocation3]
    $region5: #{tpu_custom_call.1} parent=1 // pred_fallthru
      _
    // Predicated region
    $region6: #{tpu_custom_call.1} parent=1 // pred_check
      _
    $region7: #{tpu_custom_call.1} parent=1 // pred_check_branch
      %19 = sbr.rel (0) target = $region9
    $region8: #{tpu_custom_call.1} parent=1 // pred_region
      %20 = dma.done [#allocation3], 16
    $region9: #{tpu_custom_call.1} parent=1 // pred_fallthru
      _
    %v21 = vld [vmem:[#allocation2] sm:$0x1]
    %v22 = vxor.u32 %v21, 2147483648
    %v23 = vmul.f32 %v22, 1.442695
    %v24 = vpow.pop %v23
    %v25 = vadd.f32 %v24, 1.0
    %v26 = vrcp.pop %v25
    %v27 = vmul.f32 1.0, %v26
    %28 = vst [vmem:[#allocation5] sm:$0x1] %v27
    // Predicated region
    $region10: #{tpu_custom_call.1} parent=1 // pred_check
      _
    $region11: #{tpu_custom_call.1} parent=1 // pred_check_branch
      %30 = sbr.rel (0) target = $region13
    $region12: #{tpu_custom_call.1} parent=1 // pred_region
      %s32 = ssub.s32 16, 16
      %33 = vsyncadd [#allocation4], %s32
      %s35 = sshll.u32 [#allocation5], 4
      %s36 = int_to_ptr.vmem [resolvable:$true] %s35
      %38 = dma.vmem_to_hbm [thread:$0]  %s36, 16, %s1, [#allocation4]
    $region13: #{tpu_custom_call.1} parent=1 // pred_fallthru
      _
    // Predicated region
    $region14: #{tpu_custom_call.1} parent=1 // pred_check
      _
    $region15: #{tpu_custom_call.1} parent=1 // pred_check_branch
      %40 = sbr.rel (0) target = $region17
    $region16: #{tpu_custom_call.1} parent=1 // pred_region
      %41 = dma.done [#allocation4], 16
    $region17: #{tpu_custom_call.1} parent=1 // pred_fallthru
      _
    %42 = vsyncpa [#allocation3], 1
    %43 = vsyncpa [#allocation4], 1

</llo_original>
